<compile_context>
chip_gen: v7x
topology: tpu7x:2x2x1
jax: 0.10.0
libtpu: 0.0.40
codegen_flags: <defaults>
</compile_context>

<pallas_src>
import jax
import jax.numpy as jnp
from jax.experimental import pallas as pl
from jax.experimental.pallas import tpu as pltpu


def _cdiv(a, b):
    return -(-a // b)


def _round_up(x, m):
    return _cdiv(x, m) * m


def encoder_kernel(ft_ref, w_ref, o_ref):
    """out tile (N, TK) = relu( W (N, L) @ framesT (L, TK) ), f32 accumulate."""
    prec = (jax.lax.Precision.HIGHEST
            if ft_ref.dtype == jnp.float32 else jax.lax.Precision.DEFAULT)
    y = jnp.dot(w_ref[...], ft_ref[...],
                preferred_element_type=jnp.float32,
                precision=prec)
    o_ref[...] = jnp.maximum(y, 0.0).astype(o_ref.dtype)


def encoder_forward(mixture, weight, L, *,
                    compute_dtype=jnp.bfloat16,
                    out_dtype=jnp.float32):
    """mixture: (B, T); weight: (N, 1, L) torch Conv1d layout.

    Returns mixture_w: (B, N, K) with K = (T - L) // (L//2) + 1, matching
    relu(Conv1d(1, N, kernel_size=L, stride=L//2, bias=False)).
    """
    B, T = mixture.shape
    N = weight.shape[0]
    H = L // 2
    assert T >= L, "sequence shorter than the encoder kernel"
    K = (T - L) // H + 1

    # ---- wrapper: K-major framing (transposed im2col), bf16 by default -----
    cd = jnp.dtype(compute_dtype)
    if L % 2 == 0:
        # framesT[b, l, k] = mixture[b, k*H + l]; built from the two halves.
        p1 = mixture[:, :K * H].reshape(B, K, H).transpose(0, 2, 1)       # (B,H,K)
        p2 = mixture[:, H:H + K * H].reshape(B, K, H).transpose(0, 2, 1)  # (B,H,K)
        frames_t = jnp.concatenate([p1, p2], axis=1)                      # (B,L,K)
    else:
        idx = jnp.arange(L)[:, None] + jnp.arange(K)[None, :] * H         # (L,K)
        frames_t = jnp.take(mixture, idx, axis=1)                         # (B,L,K)
    frames_t = frames_t.astype(cd)

    # ---- K tiling: lane-dense (multiple of 128), capped, low padding waste --
    n_tiles = _cdiv(_round_up(K, 128), 1024)
    TK = _round_up(_cdiv(K, n_tiles), 128)
    nK = _cdiv(K, TK)
    K_pad = nK * TK
    if K_pad != K:  # zero-pad input columns; output stays exactly (B, N, K)
        frames_t = jnp.pad(frames_t, ((0, 0), (0, 0), (0, K_pad - K)))

    w = weight.reshape(N, L).astype(cd)

    cost = pl.CostEstimate(
        flops=2 * B * N * L * K,
        transcendentals=0,
        bytes_accessed=(frames_t.size * cd.itemsize
                        + w.size * cd.itemsize
                        + B * N * K * jnp.dtype(out_dtype).itemsize))

    return pl.pallas_call(
        encoder_kernel,
        out_shape=jax.ShapeDtypeStruct((B, N, K), out_dtype),
        grid_spec=pltpu.PrefetchScalarGridSpec(
            num_scalar_prefetch=0,
            grid=(B, nK),
            in_specs=[
                pl.BlockSpec((None, L, TK), lambda b, k: (b, 0, k)),  # frame cols
                pl.BlockSpec((N, L), lambda b, k: (0, 0)),            # filters
            ],
            out_specs=pl.BlockSpec((None, N, TK), lambda b, k: (b, 0, k)),
        ),
        compiler_params=pltpu.CompilerParams(
            dimension_semantics=("parallel", "parallel")),
        cost_estimate=cost,
    )(frames_t, w)


def encoder_ref(mixture, weight, L):
    """Pure-JAX reference (accurate f32) for the sanity check."""
    H = L // 2
    B, T = mixture.shape
    N = weight.shape[0]
    K = (T - L) // H + 1
    idx = jnp.arange(K)[:, None] * H + jnp.arange(L)[None, :]
    frames = jnp.take(mixture, idx, axis=1)                    # (B, K, L)
    y = jnp.einsum("bkl,nl->bnk", frames, weight.reshape(N, L),
                   precision=jax.lax.Precision.HIGHEST)
    return jnp.maximum(y, 0.0)


if __name__ == "__main__":
    # Encoder(L=16, N=64) applied to a (B=2, T=128) mixture.
    L, N = 16, 64
    B, T = 2, 128

    key = jax.random.PRNGKey(0)
    k_x, k_w = jax.random.split(key)
    mixture = jax.random.normal(k_x, (B, T), jnp.float32)
    # torch Conv1d weight layout: (out_channels, in_channels=1, kernel=L)
    weight = jax.random.normal(k_w, (N, 1, L), jnp.float32) / jnp.sqrt(jnp.float32(L))

    H = L // 2
    K = (T - L) // H + 1
    ref = encoder_ref(mixture, weight, L)

    # Default path: bf16 operands (mem-bound op), f32 accumulate, f32 output.
    fwd = jax.jit(lambda m, w: encoder_forward(m, w, L))
    out = jax.block_until_ready(fwd(mixture, weight))
    assert out.shape == (B, N, K), out.shape
    assert jnp.allclose(out, ref, atol=6e-2, rtol=6e-2)

    # f32 operand path (HIGHEST MXU precision): tight parity with the conv.
    fwd_f32 = jax.jit(lambda m, w: encoder_forward(
        m, w, L, compute_dtype=jnp.float32))
    out_f32 = jax.block_until_ready(fwd_f32(mixture, weight))
    assert jnp.allclose(out_f32, ref, atol=1e-4, rtol=1e-4)

    # bf16 output (when downstream accepts it): halves output HBM writes.
    fwd_bf16o = jax.jit(lambda m, w: encoder_forward(
        m, w, L, out_dtype=jnp.bfloat16))
    out_b = jax.block_until_ready(fwd_bf16o(mixture, weight))
    assert out_b.shape == (B, N, K) and out_b.dtype == jnp.bfloat16
    assert jnp.allclose(out_b.astype(jnp.float32), ref, atol=8e-2, rtol=8e-2)

    print("KERNEL_OK")
</pallas_src>

<mosaic_0001>
module attributes {stable_mosaic.version = 11 : i64} {
  func.func @encoder_kernel(%arg0: i32, %arg1: i32, %arg2: memref<1x16x128xbf16, #tpu.memory_space<vmem>>, %arg3: memref<64x16xbf16, #tpu.memory_space<vmem>>, %arg4: memref<1x64x128xf32, #tpu.memory_space<vmem>>) attributes {dimension_semantics = [#tpu.dimension_semantics<parallel>, #tpu.dimension_semantics<parallel>], iteration_bounds = array<i64: 2, 1>, scalar_prefetch = 0 : i64, scratch_operands = 0 : i64, tpu.core_type = #tpu.core_type<tc>, window_params = [{transform_indices = @transform_0, window_bounds = array<i64: 1, 16, 128>}, {pipeline_mode = #tpu.pipeline_mode<synchronous>, transform_indices = @transform_1, window_bounds = array<i64: 64, 16>}, {transform_indices = @transform_2, window_bounds = array<i64: 1, 64, 128>}]} {
    %c0 = arith.constant 0 : index
    %c0_0 = arith.constant 0 : index
    %0 = vector.load %arg3[%c0, %c0_0] : memref<64x16xbf16, #tpu.memory_space<vmem>>, vector<64x16xbf16>
    %c0_1 = arith.constant 0 : index
    %c0_2 = arith.constant 0 : index
    %c0_3 = arith.constant 0 : index
    %1 = vector.load %arg2[%c0_1, %c0_2, %c0_3] : memref<1x16x128xbf16, #tpu.memory_space<vmem>>, vector<1x16x128xbf16>
    %2 = vector.shape_cast %1 : vector<1x16x128xbf16> to vector<16x128xbf16>
    %cst = arith.constant dense<0.000000e+00> : vector<64x128xf32>
    %3 = tpu.matmul %0, %2, %cst {dimension_numbers = #tpu.dot_dimension_numbers<[1], [0], [0], [1], [0, 0, 1, 1], [], []>} : vector<64x16xbf16>, vector<16x128xbf16>, vector<64x128xf32> -> vector<64x128xf32>
    %cst_4 = arith.constant 0.000000e+00 : f32
    %4 = vector.broadcast %cst_4 : f32 to vector<64x128xf32>
    %5 = arith.maximumf %3, %4 : vector<64x128xf32>
    %c0_5 = arith.constant 0 : index
    %c0_6 = arith.constant 0 : index
    %c0_7 = arith.constant 0 : index
    %6 = vector.load %arg4[%c0_5, %c0_6, %c0_7] : memref<1x64x128xf32, #tpu.memory_space<vmem>>, vector<1x64x128xf32>
    %7 = vector.shape_cast %6 : vector<1x64x128xf32> to vector<64x128xf32>
    %8 = vector.shape_cast %5 : vector<64x128xf32> to vector<1x64x128xf32>
    tpu.vector_store %arg4[%c0_5, %c0_6, %c0_7], %8 {strides = array<i32>} : memref<1x64x128xf32, #tpu.memory_space<vmem>>, vector<1x64x128xf32>,
    return
  }
  func.func @transform_0(%arg0: i32, %arg1: i32) -> (i32, i32, i32) {
    %c0_i32 = arith.constant 0 : i32
    %c0_i32_0 = arith.constant 0 : i32
    return %arg0, %c0_i32, %arg1 : i32, i32, i32
  }
  func.func @transform_1(%arg0: i32, %arg1: i32) -> (i32, i32) {
    %c0_i32 = arith.constant 0 : i32
    %c0_i32_0 = arith.constant 0 : i32
    %c0_i32_1 = arith.constant 0 : i32
    return %c0_i32, %c0_i32_0 : i32, i32
  }
  func.func @transform_2(%arg0: i32, %arg1: i32) -> (i32, i32, i32) {
    %c0_i32 = arith.constant 0 : i32
    %c0_i32_0 = arith.constant 0 : i32
    return %arg0, %c0_i32, %arg1 : i32, i32, i32
  }
}

</mosaic_0001>

<llo_original>
// kernel: _lambda_.1
$region0: #{_lambda_.1}
  #allocation0 [shape = 'u32[]', space=smem, size = 0x4, offset = 0x4, fixed_abs, tag = 'smem constant byte address 0x4 - core index']
  #allocation1 [shape = 'u32[144,128]{1,0:T(1,128)}', space=vmem, size = 0x12000, scoped, tag = 'internal scratch']
  %s0 = inlined_call_operand.vmem [shape: bf16[2,16,128], index: 0, kind: input, shape index: {}]
  %s1 = inlined_call_operand.vmem [shape: bf16[64,16], index: 1, kind: input, shape index: {}]
  %s2 = inlined_call_operand.vmem [shape: f32[2,64,15], index: 2, kind: output, shape index: {}]
  %s3 = sld [smem:[#allocation0]]
  $region41: #{_lambda_.1} parent=0
    _
  %s5 = ssub.s32 1, %s3
  %s6 = scalar_select 0, %s5, %s3
  loop: start=0, step=1, limit=4
  $region2: #{_lambda_.1} parent=0 // loop_pre_header
    _
  $region3: #{_lambda_.1} parent=0 // loop_header
    %s8 = sphi 0, %s12
    %p9 = scmp.ge.s32.totalorder %s8, 4
    %s15 = sphi 0, %s27
    %s16 = sphi 0, %s23
    %s17 = sphi 0, %s15
    %s18 = sphi 0, %s16
    %s19 = sphi 0, %s17
    %s20 = sphi 0, %s18
    %s32 = sphi 0, %s34
    %s35 = sphi 0, %s32
    %s36 = sphi 0, %s35
    %s52 = sphi 0, %s36
    %s56 = sphi 0, %s56
    %s58 = sphi 0, %s56
    %s59 = sphi 0, %s58
    %s73 = sphi 0, %s59
    %s81 = sphi 0, %s83
    %s84 = sphi 0, %s81
    %s85 = sphi 0, %s84
    %s101 = sphi 0, %s85
  $region4: #{_lambda_.1} parent=0 // loop_header_branch
    %11 = sbr.rel (%p9) target = $region8
  $region5: #{_lambda_.1} parent=0 // loop_body
    %s13 = ssub.s32 %s8, 1
    %s14 = ssub.s32 %s8, 2
    %s21 = sadd.s32 1, %s16
    %p22 = scmp.ge.s32.totalorder %s21, 1
    %s23 = scalar_select %p22, 0, %s21
    %s24 = sadd.s32 1, %s15
    %s25 = scalar_select %p22, %s24, %s15
    %p26 = scmp.ge.s32.totalorder %s25, 2
    %s27 = scalar_select %p26, 0, %s25
    %s28 = ssub.s32 %s15, %s27
    %s29 = ssub.s32 %s16, %s23
    %s30 = sor.u32 %s28, %s29
    %p31 = scmp.eq.s32.totalorder %s30, 0
    %s33 = sadd.s32 %s32, 1
    %s34 = scalar_select %p31, %s32, %s33
    %p37 = pneg %p31
    %p38 = scmp.eq.s32.totalorder %s8, 1
    %p39 = por %p37, %p38
    %p40 = scmp.ne.s32.totalorder %s32, %s35
    %p41 = scmp.eq.s32.totalorder %s8, 0
    %p42 = por %p40, %p41
    %p43 = scmp.ne.s32.totalorder %s32, %s35
    %p44 = scmp.eq.s32.totalorder %s13, 1
    %p45 = por %p43, %p44
    %p46 = scmp.ne.s32.totalorder %s35, %s36
    %p47 = scmp.eq.s32.totalorder %s13, 0
    %p48 = por %p46, %p47
    %p49 = scmp.ne.s32.totalorder %s35, %s36
    %p50 = scmp.eq.s32.totalorder %s14, 1
    %p51 = por %p49, %p50
    %p53 = scmp.ne.s32.totalorder %s36, %s52
    %p54 = scmp.eq.s32.totalorder %s14, 0
    %p55 = por %p53, %p54
    %s57 = sadd.s32 %s56, 1
    %p60 = scmp.eq.s32.totalorder %s8, 1
    %p61 = scmp.ne.s32.totalorder %s56, %s58
    %p62 = scmp.eq.s32.totalorder %s8, 0
    %p63 = por %p61, %p62
    %p64 = scmp.ne.s32.totalorder %s56, %s58
    %p65 = scmp.eq.s32.totalorder %s13, 1
    %p66 = por %p64, %p65
    %p67 = scmp.ne.s32.totalorder %s58, %s59
    %p68 = scmp.eq.s32.totalorder %s13, 0
    %p69 = por %p67, %p68
    %p70 = scmp.ne.s32.totalorder %s58, %s59
    %p71 = scmp.eq.s32.totalorder %s14, 1
    %p72 = por %p70, %p71
    %p74 = scmp.ne.s32.totalorder %s59, %s73
    %p75 = scmp.eq.s32.totalorder %s14, 0
    %p76 = por %p74, %p75
    %s77 = ssub.s32 %s15, %s27
    %s78 = ssub.s32 %s16, %s23
    %s79 = sor.u32 %s77, %s78
    %p80 = scmp.eq.s32.totalorder %s79, 0
    %s82 = sadd.s32 %s81, 1
    %s83 = scalar_select %p80, %s81, %s82
    %p86 = pneg %p80
    %p87 = scmp.eq.s32.totalorder %s8, 1
    %p88 = por %p86, %p87
    %p89 = scmp.ne.s32.totalorder %s81, %s84
    %p90 = scmp.eq.s32.totalorder %s8, 0
    %p91 = por %p89, %p90
    %p92 = scmp.ne.s32.totalorder %s81, %s84
    %p93 = scmp.eq.s32.totalorder %s13, 1
    %p94 = por %p92, %p93
    %p95 = scmp.ne.s32.totalorder %s84, %s85
    %p96 = scmp.eq.s32.totalorder %s13, 0
    %p97 = por %p95, %p96
    %p98 = scmp.ne.s32.totalorder %s84, %s85
    %p99 = scmp.eq.s32.totalorder %s14, 1
    %p100 = por %p98, %p99
    %p102 = scmp.ne.s32.totalorder %s85, %s101
    %p103 = scmp.eq.s32.totalorder %s14, 0
    %p104 = por %p102, %p103
    %p105 = scmp.le.s32.totalorder 1, %s8
    %p106 = scmp.lt.s32.totalorder %s8, 3
    %p107 = pnand %p105, %p106
    %p108 = pneg %p107
    // Predicated region
    $region9: #{_lambda_.1} parent=5 // pred_check
      _
    $region10: #{_lambda_.1} parent=5 // pred_check_branch
      %110 = sbr.rel (%p107) target = $region12
    $region11: #{_lambda_.1} parent=5 // pred_region
      %s111 = ssub.s32 %s8, 1
      // Predicated region
      $region13: #{_lambda_.1} parent=11 // pred_check
        %p112 = pneg %p69
      $region14: #{_lambda_.1} parent=11 // pred_check_branch
        %114 = sbr.rel (%p112) target = $region16
      $region15: #{_lambda_.1} parent=11 // pred_region
        _
      $region16: #{_lambda_.1} parent=11 // pred_fallthru
        _
    $region12: #{_lambda_.1} parent=5 // pred_fallthru
      _
    %p115 = scmp.lt.s32.totalorder %s8, 2
    // Predicated region
    $region17: #{_lambda_.1} parent=5 // pred_check
      %p116 = pneg %p115
    $region18: #{_lambda_.1} parent=5 // pred_check_branch
      %118 = sbr.rel (%p116) target = $region20
    $region19: #{_lambda_.1} parent=5 // pred_region
      // Predicated region
      $region21: #{_lambda_.1} parent=19 // pred_check
        %p119 = pneg %p42
      $region22: #{_lambda_.1} parent=19 // pred_check_branch
        %121 = sbr.rel (%p119) target = $region24
      $region23: #{_lambda_.1} parent=19 // pred_region
        %p122 = scmp.lt.s32.totalorder %s15, 1
        %s123 = scalar_select %p122, %s15, 1
        %p124 = scmp.lt.s32.totalorder %s16, 0
        %s125 = scalar_select %p124, %s16, 0
        %s126 = smul.addr %s123, 2
        %s127 = sadd.s32 %s125, %s126
        %s128 = smul.addr %s127, 4
        %s129 = scalar_lea.vmem %s0, %s128
      $region24: #{_lambda_.1} parent=19 // pred_fallthru
        _
    $region20: #{_lambda_.1} parent=5 // pred_fallthru
      _
    %p130 = scmp.le.s32.totalorder 1, %s8
    %p131 = scmp.lt.s32.totalorder %s8, 3
    %p132 = pnand %p130, %p131
    %p133 = pneg %p132
    // Predicated region
    $region25: #{_lambda_.1} parent=5 // pred_check
      _
    $region26: #{_lambda_.1} parent=5 // pred_check_branch
      %135 = sbr.rel (%p132) target = $region28
    $region27: #{_lambda_.1} parent=5 // pred_region
      %s136 = ssub.s32 %s8, 1
      %p137 = scmp.lt.s32.totalorder %s17, 1
      %s138 = scalar_select %p137, %s17, 1
      %p139 = scmp.lt.s32.totalorder %s18, 0
      %s140 = scalar_select %p139, %s18, 0
      %s141 = smul.addr %s138, 2
      %s142 = sadd.s32 %s140, %s141
      %s143 = smul.addr %s142, 4
      %s144 = scalar_lea.vmem %s0, %s143
      %p145 = pneg %p48
      %p146 = pneg %p45
      %p147 = pneg %p69
      %p148 = pneg %p66
      %p149 = pneg %p97
      %p150 = pneg %p94
      %p151 = scmp.lt.s32.totalorder %s17, 1
      %s152 = scalar_select %p151, %s17, 1
      %p153 = scmp.lt.s32.totalorder %s18, 0
      %s154 = scalar_select %p153, %s18, 0
      %s155 = smul.addr %s152, 8
      %s156 = sadd.s32 %s154, %s155
      %s157 = smul.addr %s156, 8
      %s158 = scalar_lea.vmem %s2, %s157
      %p159 = scmp.lt.s32.totalorder %s17, 1
      %s160 = scalar_select %p159, %s17, 1
      %p161 = scmp.lt.s32.totalorder %s18, 0
      %s162 = scalar_select %p161, %s18, 0
      %s163 = smul.addr %s160, 2
      %s164 = sadd.s32 %s162, %s163
      %s165 = smul.addr %s164, 4
      %s166 = scalar_lea.vmem %s0, %s165
      %p167 = scmp.lt.s32.totalorder %s17, 1
      %s168 = scalar_select %p167, %s17, 1
      %p169 = scmp.lt.s32.totalorder %s18, 0
      %s170 = scalar_select %p169, %s18, 0
      %s171 = smul.addr %s168, 8
      %s172 = sadd.s32 %s170, %s171
      %s173 = smul.addr %s172, 8
      %s174 = scalar_lea.vmem %s2, %s173
      %v176 = vld [vmem:[%s1] sm:$0xf]
      %v177 = vld [vmem:[%s1 + $0x4] sm:$0xf]
      %v178 = vld [vmem:[%s1 + $0x8] sm:$0xf]
      %v179 = vld [vmem:[%s1 + $0xc] sm:$0xf]
      %v180 = vld [vmem:[%s1 + $0x10] sm:$0xf]
      %v181 = vld [vmem:[%s1 + $0x14] sm:$0xf]
      %v182 = vld [vmem:[%s1 + $0x18] sm:$0xf]
      %v183 = vld [vmem:[%s1 + $0x1c] sm:$0xf]
      %v184 = vld [vmem:[%s166] sm:$0xf]
      %v185 = vld [vmem:[%s166 + $0x4] sm:$0xf]
      %v194 = vunpack.c.l.b16 %v176
      %v195 = vunpack.c.l.b16 %v177
      %v196 = vunpack.c.l.b16 %v178
      %v197 = vunpack.c.l.b16 %v179
      %v198 = vunpack.c.l.b16 %v180
      %v199 = vunpack.c.l.b16 %v181
      %v200 = vunpack.c.l.b16 %v182
      %v201 = vunpack.c.l.b16 %v183
      %v202 = vpack.c.b16 %v195, %v194
      %v203 = vpack.c.b16 %v197, %v196
      %v204 = vpack.c.b16 %v199, %v198
      %v205 = vpack.c.b16 %v201, %v200
      %v208 = vunpack.c.l.b16 %v184
      %v209 = vunpack.c.l.b16 %v185
      %v210 = vpack.c.b16 %v209, %v208
      %vm212 = vcmask 130048
      %v214 = vsel %vm212, %v202, 0
      %v217 = vsel %vm212, %v203, 0
      %v220 = vsel %vm212, %v204, 0
      %v223 = vsel %vm212, %v205, 0
      %225 = vmatprep.subr.bf16.mxu0 0
      %226 = vmatpush1.bf16.msra.mxu0 %v210
      %227 = vmatprep.subr.bf16.mxu0 0
      %228 = vmatpush1.bf16.msra.mxu0 0
      %229 = vmatprep.subr.bf16.mxu0 0
      %230 = vmatpush1.bf16.msra.mxu0 0
      %231 = vmatprep.subr.bf16.mxu0 0
      %232 = vmatpush1.bf16.msra.mxu0 0
      %233 = vmatprep.subr.bf16.mxu0 0
      %234 = vmatpush1.bf16.msra.mxu0 0
      %235 = vmatprep.subr.bf16.mxu0 0
      %236 = vmatpush1.bf16.msra.mxu0 0
      %237 = vmatprep.subr.bf16.mxu0 0
      %238 = vmatpush1.bf16.msra.mxu0 0
      %239 = vmatprep.subr.bf16.mxu0 0
      %240 = vmatpush1.bf16.msra.mxu0 0
      %241 = vmatprep.subr.bf16.mxu0 0
      %242 = vmatpush1.bf16.msra.mxu0 0
      %243 = vmatprep.subr.bf16.mxu0 0
      %244 = vmatpush1.bf16.msra.mxu0 0
      %245 = vmatprep.subr.bf16.mxu0 0
      %246 = vmatpush1.bf16.msra.mxu0 0
      %247 = vmatprep.subr.bf16.mxu0 0
      %248 = vmatpush1.bf16.msra.mxu0 0
      %249 = vmatprep.subr.bf16.mxu0 0
      %250 = vmatpush1.bf16.msra.mxu0 0
      %251 = vmatprep.subr.bf16.mxu0 0
      %252 = vmatpush1.bf16.msra.mxu0 0
      %253 = vmatprep.subr.bf16.mxu0 0
      %254 = vmatpush1.bf16.msra.mxu0 0
      %255 = vmatprep.subr.bf16.mxu0 0
      %256 = vmatpush1.bf16.msra.mxu0 0
      %257 = vmatprep.mubr.bf16.mxu0 0
      %258 = vmatmul.mubr.bf16.gmra.mrb[0].mxu0 %v214
      %v259 = vpop.f32.mrb[0].mxu0
      %v260 = vadd.f32 0.0, %v259
      %v261 = vpop.f32.mrb[0].mxu0
      %v262 = vpop.f32.mrb[0].mxu0
      %v263 = vadd.f32 0.0, %v262
      %v264 = vpop.f32.mrb[0].mxu0
      %265 = vmatprep.mubr.bf16.mxu0 0
      %266 = vmatmul.mubr.bf16.gmra.mrb[0].mxu0 %v217
      %v267 = vpop.f32.mrb[0].mxu0
      %v268 = vadd.f32 0.0, %v267
      %v269 = vpop.f32.mrb[0].mxu0
      %v270 = vpop.f32.mrb[0].mxu0
      %v271 = vadd.f32 0.0, %v270
      %v272 = vpop.f32.mrb[0].mxu0
      %273 = vmatprep.mubr.bf16.mxu0 0
      %274 = vmatmul.mubr.bf16.gmra.mrb[0].mxu0 %v220
      %v275 = vpop.f32.mrb[0].mxu0
      %v276 = vadd.f32 0.0, %v275
      %v277 = vpop.f32.mrb[0].mxu0
      %v278 = vpop.f32.mrb[0].mxu0
      %v279 = vadd.f32 0.0, %v278
      %v280 = vpop.f32.mrb[0].mxu0
      %281 = vmatprep.mubr.bf16.mxu0 0
      %282 = vmatmul.mubr.bf16.gmra.mrb[0].mxu0 %v223
      %v283 = vpop.f32.mrb[0].mxu0
      %v284 = vadd.f32 0.0, %v283
      %v285 = vpop.f32.mrb[0].mxu0
      %v286 = vpop.f32.mrb[0].mxu0
      %v287 = vadd.f32 0.0, %v286
      %v288 = vpop.f32.mrb[0].mxu0
      %289 = vdwg.mxu0
      %v290 = vmax.f32 %v260, 0.0
      %v291 = vmax.f32 %v263, 0.0
      %v292 = vmax.f32 %v268, 0.0
      %v293 = vmax.f32 %v271, 0.0
      %v294 = vmax.f32 %v276, 0.0
      %v295 = vmax.f32 %v279, 0.0
      %v296 = vmax.f32 %v284, 0.0
      %v297 = vmax.f32 %v287, 0.0
      %298 = vst [vmem:[%s174] sm:$0xff] %v290
      %299 = vst [vmem:[%s174 + $0x8] sm:$0xff] %v291
      %300 = vst [vmem:[%s174 + $0x10] sm:$0xff] %v292
      %301 = vst [vmem:[%s174 + $0x18] sm:$0xff] %v293
      %302 = vst [vmem:[%s174 + $0x20] sm:$0xff] %v294
      %303 = vst [vmem:[%s174 + $0x28] sm:$0xff] %v295
      %304 = vst [vmem:[%s174 + $0x30] sm:$0xff] %v296
      %305 = vst [vmem:[%s174 + $0x38] sm:$0xff] %v297
      %p306 = scmp.lt.s32.totalorder %s17, 1
      %s307 = scalar_select %p306, %s17, 1
      %p308 = scmp.lt.s32.totalorder %s18, 0
      %s309 = scalar_select %p308, %s18, 0
      %s310 = smul.addr %s307, 8
      %s311 = sadd.s32 %s309, %s310
      %s312 = smul.addr %s311, 8
      %s313 = scalar_lea.vmem %s2, %s312
      // Predicated region
      $region29: #{_lambda_.1} parent=27 // pred_check
        %p314 = pneg %p94
      $region30: #{_lambda_.1} parent=27 // pred_check_branch
        %316 = sbr.rel (%p314) target = $region32
      $region31: #{_lambda_.1} parent=27 // pred_region
        _
      $region32: #{_lambda_.1} parent=27 // pred_fallthru
        _
    $region28: #{_lambda_.1} parent=5 // pred_fallthru
      _
    %p317 = scmp.le.s32.totalorder 2, %s8
    // Predicated region
    $region33: #{_lambda_.1} parent=5 // pred_check
      %p318 = pneg %p317
    $region34: #{_lambda_.1} parent=5 // pred_check_branch
      %320 = sbr.rel (%p318) target = $region36
    $region35: #{_lambda_.1} parent=5 // pred_region
      %s321 = ssub.s32 %s8, 2
      // Predicated region
      $region37: #{_lambda_.1} parent=35 // pred_check
        %p322 = pneg %p100
      $region38: #{_lambda_.1} parent=35 // pred_check_branch
        %324 = sbr.rel (%p322) target = $region40
      $region39: #{_lambda_.1} parent=35 // pred_region
        %p325 = scmp.lt.s32.totalorder %s19, 1
        %s326 = scalar_select %p325, %s19, 1
        %p327 = scmp.lt.s32.totalorder %s20, 0
        %s328 = scalar_select %p327, %s20, 0
        %s329 = smul.addr %s326, 8
        %s330 = sadd.s32 %s328, %s329
        %s331 = smul.addr %s330, 8
        %s332 = scalar_lea.vmem %s2, %s331
      $region40: #{_lambda_.1} parent=35 // pred_fallthru
        _
    $region36: #{_lambda_.1} parent=5 // pred_fallthru
      _
  $region6: #{_lambda_.1} parent=0 // loop_footer
    %s12 = sadd.s32 1, %s8
  $region7: #{_lambda_.1} parent=0 // loop_footer_branch
    %7 = sbr.rel target = $region3
  $region8: #{_lambda_.1} parent=0 // loop_exit
    _

</llo_original>
